<compile_context>
chip_gen: v5e
topology: v5e:2x2
jax: 0.10.0
libtpu: 0.0.40
codegen_flags: <defaults>
</compile_context>

<pallas_src>
import jax
import jax.numpy as jnp
from jax import lax
from jax.experimental import pallas as pl
from jax.experimental.pallas import tpu as pltpu

# Packed-parameter layout (row offsets in the (_PACK_ROWS, 1) buffer).
_B1_OFF, _B1_LEN = 0, 32
_B2_OFF, _B2_LEN = 32, 10
_W3_OFF, _W3_LEN = 48, 10
_B3_OFF = 64
_PACK_ROWS = 72


def mlp_kernel(x_ref, w1_ref, w2_ref, p_ref, o_ref):
    x = x_ref[...]          # (TB, 13)  batch-major input tile
    w1 = w1_ref[...]        # (32, 13)  PyTorch layout [out, in]
    w2 = w2_ref[...]        # (10, 32)

    b1 = p_ref[_B1_OFF:_B1_OFF + _B1_LEN, :]   # (32, 1)
    b2 = p_ref[_B2_OFF:_B2_OFF + _B2_LEN, :]   # (10, 1)
    w3 = p_ref[_W3_OFF:_W3_OFF + _W3_LEN, :]   # (10, 1)
    b3 = p_ref[_B3_OFF:_B3_OFF + 1, :]         # (1, 1)

    # layer1: relu(W1 @ x^T + b1) -> (32, TB); batch on lanes (MXU, K=13).
    h1 = lax.dot_general(w1, x, (((1,), (1,)), ((), ())),
                         preferred_element_type=jnp.float32)
    h1 = jnp.maximum(h1 + b1, 0.0)

    # layer2: relu(W2 @ h1 + b2) -> (10, TB)  (MXU, K=32).
    h2 = jnp.dot(w2, h1, preferred_element_type=jnp.float32)
    h2 = jnp.maximum(h2 + b2, 0.0)

    # layer3 Linear(10, 1): N=1 matmul replaced by VPU mul + sublane reduce.
    out = jnp.sum(h2 * w3, axis=0, keepdims=True) + b3     # (1, TB) lane-dense
    o_ref[...] = out.astype(o_ref.dtype)


def _pack_small_params(b1, b2, w3, b3):
    """Pack b1 (32,), b2 (10,), w3 (1,10), b3 (1,) into one (72, 1) column."""
    p = jnp.zeros((_PACK_ROWS, 1), jnp.float32)
    p = p.at[_B1_OFF:_B1_OFF + _B1_LEN, 0].set(b1.reshape(-1))
    p = p.at[_B2_OFF:_B2_OFF + _B2_LEN, 0].set(b2.reshape(-1))
    p = p.at[_W3_OFF:_W3_OFF + _W3_LEN, 0].set(w3.reshape(-1))
    p = p.at[_B3_OFF, 0].set(b3.reshape(-1)[0])
    return p


def mlp_forward(x, w1, b1, w2, b2, w3, b3, *, tile_b=1024):
    """x: (B, 13); weights/biases in PyTorch nn.Linear layout ([out, in] / [out])."""
    B = x.shape[0]
    pvec = _pack_small_params(b1, b2, w3, b3)

    # Batch tile: whole batch if small, otherwise a multiple of 128 sized well
    # under v7x's 64 MiB VMEM (TB=1024 f32 -> ~0.5 MiB per x buffer, x2 bufs).
    if B <= tile_b:
        tb = B
    else:
        tb = max(128, (tile_b // 128) * 128)
    grid = (pl.cdiv(B, tb),)

    out_t = pl.pallas_call(
        mlp_kernel,
        out_shape=jax.ShapeDtypeStruct((1, B), jnp.float32),
        grid_spec=pltpu.PrefetchScalarGridSpec(
            num_scalar_prefetch=0,
            grid=grid,
            in_specs=[
                pl.BlockSpec((tb, 13), lambda i: (i, 0)),          # x tile
                pl.BlockSpec((32, 13), lambda i: (0, 0)),          # w1 (resident)
                pl.BlockSpec((10, 32), lambda i: (0, 0)),          # w2 (resident)
                pl.BlockSpec((_PACK_ROWS, 1), lambda i: (0, 0)),   # packed b1/b2/w3/b3
            ],
            out_specs=pl.BlockSpec((1, tb), lambda i: (0, i)),     # lane-dense out
        ),
        compiler_params=pltpu.CompilerParams(
            dimension_semantics=("parallel",)),
    )(x, w1, w2, pvec)

    # (1, B) lane-dense kernel output -> (B, 1) to match nn.Linear semantics.
    return out_t.reshape(B, 1)


def init_linear_params(key, fan_in, fan_out):
    """PyTorch-style nn.Linear init: U(+-1/sqrt(fan_in)); W shape [out, in]."""
    kw, kb = jax.random.split(key)
    bound = 1.0 / jnp.sqrt(float(fan_in))
    w = jax.random.uniform(kw, (fan_out, fan_in), jnp.float32, -bound, bound)
    b = jax.random.uniform(kb, (fan_out,), jnp.float32, -bound, bound)
    return w, b


def reference_forward(x, w1, b1, w2, b2, w3, b3):
    h1 = jnp.maximum(x @ w1.T + b1, 0.0)
    h2 = jnp.maximum(h1 @ w2.T + b2, 0.0)
    return h2 @ w3.T + b3


if __name__ == "__main__":
    key = jax.random.PRNGKey(0)
    k_x, k1, k2, k3 = jax.random.split(key, 4)

    B = 256                       # small batch; tile_b=128 -> 2 grid steps
    x = jax.random.normal(k_x, (B, 13), jnp.float32)

    w1, b1 = init_linear_params(k1, 13, 32)
    w2, b2 = init_linear_params(k2, 32, 10)
    w3, b3 = init_linear_params(k3, 10, 1)

    out = mlp_forward(x, w1, b1, w2, b2, w3, b3, tile_b=128)
    out = jax.block_until_ready(out)

    ref = reference_forward(x, w1, b1, w2, b2, w3, b3)
    assert out.shape == (B, 1), out.shape
    assert jnp.allclose(out, ref, atol=2e-5, rtol=2e-5), "mismatch vs reference"

    print("KERNEL_OK")
</pallas_src>

<mosaic_0001>
module attributes {stable_mosaic.version = 11 : i64} {
  func.func @mlp_kernel(%arg0: i32, %arg1: memref<128x13xf32, #tpu.memory_space<vmem>>, %arg2: memref<32x13xf32, #tpu.memory_space<vmem>>, %arg3: memref<10x32xf32, #tpu.memory_space<vmem>>, %arg4: memref<72x1xf32, #tpu.memory_space<vmem>>, %arg5: memref<1x128xf32, #tpu.memory_space<vmem>>) attributes {dimension_semantics = [#tpu.dimension_semantics<parallel>], iteration_bounds = array<i64: 2>, scalar_prefetch = 0 : i64, scratch_operands = 0 : i64, tpu.core_type = #tpu.core_type<tc>, window_params = [{transform_indices = @transform_0, window_bounds = array<i64: 128, 13>}, {pipeline_mode = #tpu.pipeline_mode<synchronous>, transform_indices = @transform_1, window_bounds = array<i64: 32, 13>}, {pipeline_mode = #tpu.pipeline_mode<synchronous>, transform_indices = @transform_2, window_bounds = array<i64: 10, 32>}, {pipeline_mode = #tpu.pipeline_mode<synchronous>, transform_indices = @transform_3, window_bounds = array<i64: 72, 1>}, {transform_indices = @transform_4, window_bounds = array<i64: 1, 128>}]} {
    %c0 = arith.constant 0 : index
    %c0_0 = arith.constant 0 : index
    %0 = vector.load %arg1[%c0, %c0_0] : memref<128x13xf32, #tpu.memory_space<vmem>>, vector<128x13xf32>
    %c0_1 = arith.constant 0 : index
    %c0_2 = arith.constant 0 : index
    %1 = vector.load %arg2[%c0_1, %c0_2] : memref<32x13xf32, #tpu.memory_space<vmem>>, vector<32x13xf32>
    %c0_3 = arith.constant 0 : index
    %c0_4 = arith.constant 0 : index
    %2 = vector.load %arg3[%c0_3, %c0_4] : memref<10x32xf32, #tpu.memory_space<vmem>>, vector<10x32xf32>
    %c0_5 = arith.constant 0 : index
    %c0_6 = arith.constant 0 : index
    %3 = vector.load %arg4[%c0_5, %c0_6] : memref<72x1xf32, #tpu.memory_space<vmem>>, vector<32x1xf32>
    %c32 = arith.constant 32 : index
    %c0_7 = arith.constant 0 : index
    %4 = vector.load %arg4[%c32, %c0_7] : memref<72x1xf32, #tpu.memory_space<vmem>>, vector<10x1xf32>
    %c48 = arith.constant 48 : index
    %c0_8 = arith.constant 0 : index
    %5 = vector.load %arg4[%c48, %c0_8] : memref<72x1xf32, #tpu.memory_space<vmem>>, vector<10x1xf32>
    %c64 = arith.constant 64 : index
    %c0_9 = arith.constant 0 : index
    %6 = vector.load %arg4[%c64, %c0_9] : memref<72x1xf32, #tpu.memory_space<vmem>>, vector<1x1xf32>
    %cst = arith.constant dense<0.000000e+00> : vector<32x128xf32>
    %7 = tpu.matmul %1, %0, %cst {dimension_numbers = #tpu.dot_dimension_numbers<[1], [1], [0], [0], [0, 0, 1, 0], [], []>} : vector<32x13xf32>, vector<128x13xf32>, vector<32x128xf32> -> vector<32x128xf32>
    %8 = vector.broadcast %3 : vector<32x1xf32> to vector<32x128xf32>
    %9 = arith.addf %7, %8 : vector<32x128xf32>
    %cst_10 = arith.constant 0.000000e+00 : f32
    %10 = vector.broadcast %cst_10 : f32 to vector<32x128xf32>
    %11 = arith.maximumf %9, %10 : vector<32x128xf32>
    %cst_11 = arith.constant dense<0.000000e+00> : vector<10x128xf32>
    %12 = tpu.matmul %2, %11, %cst_11 {dimension_numbers = #tpu.dot_dimension_numbers<[1], [0], [0], [1], [0, 0, 1, 1], [], []>} : vector<10x32xf32>, vector<32x128xf32>, vector<10x128xf32> -> vector<10x128xf32>
    %13 = vector.broadcast %4 : vector<10x1xf32> to vector<10x128xf32>
    %14 = arith.addf %12, %13 : vector<10x128xf32>
    %cst_12 = arith.constant 0.000000e+00 : f32
    %15 = vector.broadcast %cst_12 : f32 to vector<10x128xf32>
    %16 = arith.maximumf %14, %15 : vector<10x128xf32>
    %17 = vector.broadcast %5 : vector<10x1xf32> to vector<10x128xf32>
    %18 = arith.mulf %16, %17 : vector<10x128xf32>
    %cst_13 = arith.constant dense<0.000000e+00> : vector<128xf32>
    %19 = vector.multi_reduction <add>, %18, %cst_13 [0] : vector<10x128xf32> to vector<128xf32>
    %20 = vector.shape_cast %19 : vector<128xf32> to vector<1x128xf32>
    %21 = vector.broadcast %6 : vector<1x1xf32> to vector<1x128xf32>
    %22 = arith.addf %20, %21 : vector<1x128xf32>
    %c0_14 = arith.constant 0 : index
    %c0_15 = arith.constant 0 : index
    %23 = vector.load %arg5[%c0_14, %c0_15] : memref<1x128xf32, #tpu.memory_space<vmem>>, vector<1x128xf32>
    tpu.vector_store %arg5[%c0_14, %c0_15], %22 {strides = array<i32>} : memref<1x128xf32, #tpu.memory_space<vmem>>, vector<1x128xf32>,
    return
  }
  func.func @transform_0(%arg0: i32) -> (i32, i32) {
    %c0_i32 = arith.constant 0 : i32
    %c0_i32_0 = arith.constant 0 : i32
    return %arg0, %c0_i32 : i32, i32
  }
  func.func @transform_1(%arg0: i32) -> (i32, i32) {
    %c0_i32 = arith.constant 0 : i32
    %c0_i32_0 = arith.constant 0 : i32
    %c0_i32_1 = arith.constant 0 : i32
    return %c0_i32, %c0_i32_0 : i32, i32
  }
  func.func @transform_2(%arg0: i32) -> (i32, i32) {
    %c0_i32 = arith.constant 0 : i32
    %c0_i32_0 = arith.constant 0 : i32
    %c0_i32_1 = arith.constant 0 : i32
    return %c0_i32, %c0_i32_0 : i32, i32
  }
  func.func @transform_3(%arg0: i32) -> (i32, i32) {
    %c0_i32 = arith.constant 0 : i32
    %c0_i32_0 = arith.constant 0 : i32
    %c0_i32_1 = arith.constant 0 : i32
    return %c0_i32, %c0_i32_0 : i32, i32
  }
  func.func @transform_4(%arg0: i32) -> (i32, i32) {
    %c0_i32 = arith.constant 0 : i32
    %c0_i32_0 = arith.constant 0 : i32
    return %c0_i32, %arg0 : i32, i32
  }
}

</mosaic_0001>

<llo_original>
// kernel: tpu_custom_call.1
$region0: #{tpu_custom_call.1}
  #allocation0 [shape = 'u32[]', space=smem, size = 0x4, offset = 0x4, fixed_abs, tag = 'smem constant byte address 0x4 - core index']
  #allocation1 [shape = 'u32[72,128]{1,0:T(1,128)}', space=vmem, size = 0x9000, scoped, tag = 'internal scratch']
  %s0 = inlined_call_operand.vmem [shape: f32[256,13], index: 0, kind: input, shape index: {}]
  %s1 = inlined_call_operand.vmem [shape: f32[32,13], index: 1, kind: input, shape index: {}]
  %s2 = inlined_call_operand.vmem [shape: f32[10,32], index: 2, kind: input, shape index: {}]
  %s3 = inlined_call_operand.vmem [shape: f32[72,1], index: 3, kind: input, shape index: {}]
  %s4 = inlined_call_operand.hbm [shape: f32[1,256], index: 4, kind: output, shape index: {}]
  %s5 = sld [smem:[#allocation0]]
  $region49: #{tpu_custom_call.1} parent=0
    _
  %s7 = ssub.s32 1, %s5
  %s8 = scalar_select 0, %s7, %s5
  $region1: #{tpu_custom_call.1} parent=0
    #allocation2 [shape = 'u8[1024]{0}', space=vmem, size = 0x400, scoped, tag = 'output window, operand 0']
    #allocation3 [shape = 's32[2]{0}', space=sflag, size = 0x8, scoped, tag = 'scoped memory for tpu_custom_call.1']
    %9 = vsyncpa [#allocation3], 0
    %s10 = scalar_lea.sflag [#allocation3], 1
    %11 = vsyncpa %s10, 0
    loop: start=0, step=1, limit=4
    $region2: #{tpu_custom_call.1} parent=1 // loop_pre_header
      _
    $region3: #{tpu_custom_call.1} parent=1 // loop_header
      %s13 = sphi 0, %s17
      %p14 = scmp.ge.s32.totalorder %s13, 4
      %s23 = sphi 0, %s25
      %s26 = sphi 0, %s23
      %s27 = sphi 0, %s26
      %s43 = sphi 0, %s27
      %s47 = sphi 0, %s47
      %s49 = sphi 0, %s47
      %s50 = sphi 0, %s49
      %s64 = sphi 0, %s50
      %s68 = sphi 0, %s68
      %s70 = sphi 0, %s68
      %s71 = sphi 0, %s70
      %s85 = sphi 0, %s71
      %s89 = sphi 0, %s89
      %s91 = sphi 0, %s89
      %s92 = sphi 0, %s91
      %s106 = sphi 0, %s92
      %s112 = sphi 0, %s114
      %s115 = sphi 0, %s112
      %s116 = sphi 0, %s115
      %s132 = sphi 0, %s116
    $region4: #{tpu_custom_call.1} parent=1 // loop_header_branch
      %16 = sbr.rel (%p14) target = $region8
    $region5: #{tpu_custom_call.1} parent=1 // loop_body
      %s18 = ssub.s32 %s13, 1
      %s19 = ssub.s32 %s13, 2
      %s20 = sadd.s32 %s13, 1
      %s21 = ssub.s32 %s13, %s20
      %p22 = scmp.eq.s32.totalorder %s21, 0
      %s24 = sadd.s32 %s23, 1
      %s25 = scalar_select %p22, %s23, %s24
      %p28 = pneg %p22
      %p29 = scmp.eq.s32.totalorder %s13, 1
      %p30 = por %p28, %p29
      %p31 = scmp.ne.s32.totalorder %s23, %s26
      %p32 = scmp.eq.s32.totalorder %s13, 0
      %p33 = por %p31, %p32
      %p34 = scmp.ne.s32.totalorder %s23, %s26
      %p35 = scmp.eq.s32.totalorder %s18, 1
      %p36 = por %p34, %p35
      %p37 = scmp.ne.s32.totalorder %s26, %s27
      %p38 = scmp.eq.s32.totalorder %s18, 0
      %p39 = por %p37, %p38
      %p40 = scmp.ne.s32.totalorder %s26, %s27
      %p41 = scmp.eq.s32.totalorder %s19, 1
      %p42 = por %p40, %p41
      %p44 = scmp.ne.s32.totalorder %s27, %s43
      %p45 = scmp.eq.s32.totalorder %s19, 0
      %p46 = por %p44, %p45
      %s48 = sadd.s32 %s47, 1
      %p51 = scmp.eq.s32.totalorder %s13, 1
      %p52 = scmp.ne.s32.totalorder %s47, %s49
      %p53 = scmp.eq.s32.totalorder %s13, 0
      %p54 = por %p52, %p53
      %p55 = scmp.ne.s32.totalorder %s47, %s49
      %p56 = scmp.eq.s32.totalorder %s18, 1
      %p57 = por %p55, %p56
      %p58 = scmp.ne.s32.totalorder %s49, %s50
      %p59 = scmp.eq.s32.totalorder %s18, 0
      %p60 = por %p58, %p59
      %p61 = scmp.ne.s32.totalorder %s49, %s50
      %p62 = scmp.eq.s32.totalorder %s19, 1
      %p63 = por %p61, %p62
      %p65 = scmp.ne.s32.totalorder %s50, %s64
      %p66 = scmp.eq.s32.totalorder %s19, 0
      %p67 = por %p65, %p66
      %s69 = sadd.s32 %s68, 1
      %p72 = scmp.eq.s32.totalorder %s13, 1
      %p73 = scmp.ne.s32.totalorder %s68, %s70
      %p74 = scmp.eq.s32.totalorder %s13, 0
      %p75 = por %p73, %p74
      %p76 = scmp.ne.s32.totalorder %s68, %s70
      %p77 = scmp.eq.s32.totalorder %s18, 1
      %p78 = por %p76, %p77
      %p79 = scmp.ne.s32.totalorder %s70, %s71
      %p80 = scmp.eq.s32.totalorder %s18, 0
      %p81 = por %p79, %p80
      %p82 = scmp.ne.s32.totalorder %s70, %s71
      %p83 = scmp.eq.s32.totalorder %s19, 1
      %p84 = por %p82, %p83
      %p86 = scmp.ne.s32.totalorder %s71, %s85
      %p87 = scmp.eq.s32.totalorder %s19, 0
      %p88 = por %p86, %p87
      %s90 = sadd.s32 %s89, 1
      %p93 = scmp.eq.s32.totalorder %s13, 1
      %p94 = scmp.ne.s32.totalorder %s89, %s91
      %p95 = scmp.eq.s32.totalorder %s13, 0
      %p96 = por %p94, %p95
      %p97 = scmp.ne.s32.totalorder %s89, %s91
      %p98 = scmp.eq.s32.totalorder %s18, 1
      %p99 = por %p97, %p98
      %p100 = scmp.ne.s32.totalorder %s91, %s92
      %p101 = scmp.eq.s32.totalorder %s18, 0
      %p102 = por %p100, %p101
      %p103 = scmp.ne.s32.totalorder %s91, %s92
      %p104 = scmp.eq.s32.totalorder %s19, 1
      %p105 = por %p103, %p104
      %p107 = scmp.ne.s32.totalorder %s92, %s106
      %p108 = scmp.eq.s32.totalorder %s19, 0
      %p109 = por %p107, %p108
      %s110 = ssub.s32 %s13, %s20
      %p111 = scmp.eq.s32.totalorder %s110, 0
      %s113 = sadd.s32 %s112, 1
      %s114 = scalar_select %p111, %s112, %s113
      %p117 = pneg %p111
      %p118 = scmp.eq.s32.totalorder %s13, 1
      %p119 = por %p117, %p118
      %p120 = scmp.ne.s32.totalorder %s112, %s115
      %p121 = scmp.eq.s32.totalorder %s13, 0
      %p122 = por %p120, %p121
      %p123 = scmp.ne.s32.totalorder %s112, %s115
      %p124 = scmp.eq.s32.totalorder %s18, 1
      %p125 = por %p123, %p124
      %p126 = scmp.ne.s32.totalorder %s115, %s116
      %p127 = scmp.eq.s32.totalorder %s18, 0
      %p128 = por %p126, %p127
      %p129 = scmp.ne.s32.totalorder %s115, %s116
      %p130 = scmp.eq.s32.totalorder %s19, 1
      %p131 = por %p129, %p130
      %p133 = scmp.ne.s32.totalorder %s116, %s132
      %p134 = scmp.eq.s32.totalorder %s19, 0
      %p135 = por %p133, %p134
      %p136 = scmp.le.s32.totalorder 1, %s13
      %p137 = scmp.lt.s32.totalorder %s13, 3
      %p138 = pnand %p136, %p137
      %p139 = pneg %p138
      // Predicated region
      $region9: #{tpu_custom_call.1} parent=5 // pred_check
        _
      $region10: #{tpu_custom_call.1} parent=5 // pred_check_branch
        %141 = sbr.rel (%p138) target = $region12
      $region11: #{tpu_custom_call.1} parent=5 // pred_region
        %s142 = ssub.s32 %s13, 1
        // Predicated region
        $region13: #{tpu_custom_call.1} parent=11 // pred_check
          %p143 = pneg %p60
        $region14: #{tpu_custom_call.1} parent=11 // pred_check_branch
          %145 = sbr.rel (%p143) target = $region16
        $region15: #{tpu_custom_call.1} parent=11 // pred_region
          _
        $region16: #{tpu_custom_call.1} parent=11 // pred_fallthru
          _
        // Predicated region
        $region17: #{tpu_custom_call.1} parent=11 // pred_check
          %p146 = pneg %p81
        $region18: #{tpu_custom_call.1} parent=11 // pred_check_branch
          %148 = sbr.rel (%p146) target = $region20
        $region19: #{tpu_custom_call.1} parent=11 // pred_region
          _
        $region20: #{tpu_custom_call.1} parent=11 // pred_fallthru
          _
        // Predicated region
        $region21: #{tpu_custom_call.1} parent=11 // pred_check
          %p149 = pneg %p102
        $region22: #{tpu_custom_call.1} parent=11 // pred_check_branch
          %151 = sbr.rel (%p149) target = $region24
        $region23: #{tpu_custom_call.1} parent=11 // pred_region
          _
        $region24: #{tpu_custom_call.1} parent=11 // pred_fallthru
          _
      $region12: #{tpu_custom_call.1} parent=5 // pred_fallthru
        _
      %p152 = scmp.lt.s32.totalorder %s13, 2
      // Predicated region
      $region25: #{tpu_custom_call.1} parent=5 // pred_check
        %p153 = pneg %p152
      $region26: #{tpu_custom_call.1} parent=5 // pred_check_branch
        %155 = sbr.rel (%p153) target = $region28
      $region27: #{tpu_custom_call.1} parent=5 // pred_region
        // Predicated region
        $region29: #{tpu_custom_call.1} parent=27 // pred_check
          %p156 = pneg %p33
        $region30: #{tpu_custom_call.1} parent=27 // pred_check_branch
          %158 = sbr.rel (%p156) target = $region32
        $region31: #{tpu_custom_call.1} parent=27 // pred_region
          %s159 = smul.u32 16, %s13
          %p160 = scmp.lt.s32.totalorder %s159, 31
          %s161 = scalar_select %p160, %s159, 31
          %s162 = smul.addr %s161, 8
          %s163 = scalar_lea.vmem %s0, %s162
          %s164 = smul.u32 16, %s13
        $region32: #{tpu_custom_call.1} parent=27 // pred_fallthru
          _
      $region28: #{tpu_custom_call.1} parent=5 // pred_fallthru
        _
      %p165 = scmp.le.s32.totalorder 1, %s13
      %p166 = scmp.lt.s32.totalorder %s13, 3
      %p167 = pnand %p165, %p166
      %p168 = pneg %p167
      // Predicated region
      $region33: #{tpu_custom_call.1} parent=5 // pred_check
        _
      $region34: #{tpu_custom_call.1} parent=5 // pred_check_branch
        %170 = sbr.rel (%p167) target = $region36
      $region35: #{tpu_custom_call.1} parent=5 // pred_region
        %s171 = ssub.s32 %s13, 1
        %s172 = smul.u32 16, %s18
        %p173 = scmp.lt.s32.totalorder %s172, 31
        %s174 = scalar_select %p173, %s172, 31
        %s175 = smul.addr %s174, 8
        %s176 = scalar_lea.vmem %s0, %s175
        %p177 = pneg %p39
        %p178 = pneg %p36
        %p179 = pneg %p60
        %p180 = pneg %p57
        %p181 = pneg %p81
        %p182 = pneg %p78
        %p183 = pneg %p102
        %p184 = pneg %p99
        %p185 = pneg %p128
        %p186 = pneg %p125
        %s187 = sand.u32 %s115, 1
        %s188 = scalar_lea.sflag [#allocation3], %s187
        %s189 = sand.u32 %s115, 1
        %s190 = scalar_lea.vmem [#allocation2], %s189
        %s191 = smul.u32 16, %s18
        %p192 = scmp.lt.s32.totalorder %s191, 31
        %s193 = scalar_select %p192, %s191, 31
        %s194 = smul.addr %s193, 8
        %s195 = scalar_lea.vmem %s0, %s194
        %s196 = smul.u32 16, %s18
        %v197 = vld [vmem:[%s195] sm:$0xff]
        %v198 = vld [vmem:[%s195 + $0x8] sm:$0xff]
        %v199 = vld [vmem:[%s195 + $0x10] sm:$0xff]
        %v200 = vld [vmem:[%s195 + $0x18] sm:$0xff]
        %v201 = vld [vmem:[%s195 + $0x20] sm:$0xff]
        %v202 = vld [vmem:[%s195 + $0x28] sm:$0xff]
        %v203 = vld [vmem:[%s195 + $0x30] sm:$0xff]
        %v204 = vld [vmem:[%s195 + $0x38] sm:$0xff]
        %v205 = vld [vmem:[%s195 + $0x40] sm:$0xff]
        %v206 = vld [vmem:[%s195 + $0x48] sm:$0xff]
        %v207 = vld [vmem:[%s195 + $0x50] sm:$0xff]
        %v208 = vld [vmem:[%s195 + $0x58] sm:$0xff]
        %v209 = vld [vmem:[%s195 + $0x60] sm:$0xff]
        %v210 = vld [vmem:[%s195 + $0x68] sm:$0xff]
        %v211 = vld [vmem:[%s195 + $0x70] sm:$0xff]
        %v212 = vld [vmem:[%s195 + $0x78] sm:$0xff]
        %v213 = vld [vmem:[%s1] sm:$0xff]
        %v214 = vld [vmem:[%s1 + $0x8] sm:$0xff]
        %v215 = vld [vmem:[%s1 + $0x10] sm:$0xff]
        %v216 = vld [vmem:[%s1 + $0x18] sm:$0xff]
        %v217 = vld [vmem:[%s2] sm:$0xff]
        %v218 = vld [vmem:[%s2 + $0x8] sm:$0x3]
        %v219 = vld [vmem:[%s3] sm:$0xff]
        %v220 = vld [vmem:[%s3 + $0x8] sm:$0xff]
        %v221 = vld [vmem:[%s3 + $0x10] sm:$0xff]
        %v222 = vld [vmem:[%s3 + $0x18] sm:$0xff]
        %v223 = vld [vmem:[%s3 + $0x20] sm:$0xff]
        %v224 = vld [vmem:[%s3 + $0x28] sm:$0x3]
        %v225 = vld [vmem:[%s3 + $0x30] sm:$0xff]
        %v226 = vld [vmem:[%s3 + $0x38] sm:$0x3]
        %v227 = vld [vmem:[%s3 + $0x40] sm:$0x1]
        %229 = vset.pattern.permute.xlu0 0
        %230 = vperm.xlu0 %229, %v219
        %v231 = vpop.permute.xlu0 %230
        %234 = vset.pattern.permute.xlu0 0
        %235 = vperm.xlu0 %234, %v220
        %v236 = vpop.permute.xlu0 %235
        %239 = vset.pattern.permute.xlu0 0
        %240 = vperm.xlu0 %239, %v221
        %v241 = vpop.permute.xlu0 %240
        %244 = vset.pattern.permute.xlu0 0
        %245 = vperm.xlu0 %244, %v222
        %v246 = vpop.permute.xlu0 %245
        %vm248 = vcmask 105472
        %v250 = vsel %vm248, %v213, 0
        %v253 = vsel %vm248, %v214, 0
        %v256 = vsel %vm248, %v215, 0
        %v259 = vsel %vm248, %v216, 0
        %v262 = vsel %vm248, %v197, 0
        %v265 = vsel %vm248, %v198, 0
        %v268 = vsel %vm248, %v199, 0
        %v271 = vsel %vm248, %v200, 0
        %v274 = vsel %vm248, %v201, 0
        %v277 = vsel %vm248, %v202, 0
        %v280 = vsel %vm248, %v203, 0
        %v283 = vsel %vm248, %v204, 0
        %v286 = vsel %vm248, %v205, 0
        %v289 = vsel %vm248, %v206, 0
        %v292 = vsel %vm248, %v207, 0
        %v295 = vsel %vm248, %v208, 0
        %v298 = vsel %vm248, %v209, 0
        %v301 = vsel %vm248, %v210, 0
        %v304 = vsel %vm248, %v211, 0
        %v307 = vsel %vm248, %v212, 0
        %309 = vmatpush.xpose.msra.mxu0 %v307
        %310 = vmatpush.xpose.msra.mxu0 %v304
        %311 = vmatpush.xpose.msra.mxu0 %v301
        %312 = vmatpush.xpose.msra.mxu0 %v298
        %313 = vmatpush.xpose.msra.mxu0 %v295
        %314 = vmatpush.xpose.msra.mxu0 %v292
        %315 = vmatpush.xpose.msra.mxu0 %v289
        %316 = vmatpush.xpose.msra.mxu0 %v286
        %317 = vmatpush.xpose.msra.mxu0 %v283
        %318 = vmatpush.xpose.msra.mxu0 %v280
        %319 = vmatpush.xpose.msra.mxu0 %v277
        %320 = vmatpush.xpose.msra.mxu0 %v274
        %321 = vmatpush.xpose.msra.mxu0 %v271
        %322 = vmatpush.xpose.msra.mxu0 %v268
        %323 = vmatpush.xpose.msra.mxu0 %v265
        %324 = vmatpush.xpose.msra.mxu0 %v262
        %325 = vmatmul.f32.gmra.mxu0 %v250
        %v326 = vpop.f32.mrf.mxu0
        %v327 = vadd.f32 %v231, %v326
        %328 = vmatmul.f32.gmra.mxu0 %v253
        %v329 = vpop.f32.mrf.mxu0
        %v330 = vadd.f32 %v236, %v329
        %331 = vmatmul.f32.gmra.mxu0 %v256
        %v332 = vpop.f32.mrf.mxu0
        %v333 = vadd.f32 %v241, %v332
        %334 = vmatmul.f32.gmra.mxu0 %v259
        %v335 = vpop.f32.mrf.mxu0
        %v336 = vadd.f32 %v246, %v335
        %337 = vdwg.mxu0
        %v338 = vmax.f32 %v327, 0.0
        %v339 = vmax.f32 %v330, 0.0
        %v340 = vmax.f32 %v333, 0.0
        %v341 = vmax.f32 %v336, 0.0
        %343 = vset.pattern.permute.xlu0 0
        %344 = vperm.xlu0 %343, %v223
        %v345 = vpop.permute.xlu0 %344
        %348 = vset.pattern.permute.xlu0 0
        %349 = vperm.xlu0 %348, %v224
        %v350 = vpop.permute.xlu0 %349
        %vm352 = vcmask 261120
        %v354 = vsel %vm352, %v217, 0
        %v357 = vsel %vm352, %v218, 0
        %359 = vmatpush.msra.mxu0 0.0
        %360 = vmatpush.msra.mxu0 0.0
        %361 = vmatpush.msra.mxu0 0.0
        %362 = vmatpush.msra.mxu0 0.0
        %363 = vmatpush.msra.mxu0 0.0
        %364 = vmatpush.msra.mxu0 0.0
        %365 = vmatpush.msra.mxu0 0.0
        %366 = vmatpush.msra.mxu0 0.0
        %367 = vmatpush.msra.mxu0 0.0
        %368 = vmatpush.msra.mxu0 0.0
        %369 = vmatpush.msra.mxu0 0.0
        %370 = vmatpush.msra.mxu0 0.0
        %371 = vmatpush.msra.mxu0 %v341
        %372 = vmatpush.msra.mxu0 %v340
        %373 = vmatpush.msra.mxu0 %v339
        %374 = vmatpush.msra.mxu0 %v338
        %375 = vmatmul.f32.gmra.mxu0 %v354
        %v376 = vpop.f32.mrf.mxu0
        %v377 = vadd.f32 %v345, %v376
        %378 = vmatmul.f32.gmra.mxu0 %v357
        %v379 = vpop.f32.mrf.mxu0
        %v380 = vadd.f32 %v350, %v379
        %381 = vdwg.mxu0
        %v382 = vmax.f32 %v377, 0.0
        %v383 = vmax.f32 %v380, 0.0
        %385 = vset.pattern.permute.xlu0 0
        %386 = vperm.xlu0 %385, %v225
        %v387 = vpop.permute.xlu0 %386
        %390 = vset.pattern.permute.xlu0 0
        %391 = vperm.xlu0 %390, %v226
        %v392 = vpop.permute.xlu0 %391
        %v394 = vmul.f32 %v382, %v387
        %v395 = vmul.f32 %v383, %v392
        %vm396 = vcmask 1041408
        %v397 = vsel %vm396, %v395, 0.0
        %v398 = vadd.f32 %v394, %v397
        %v399 = vrot.slane %v398, 4
        %v400 = vadd.f32 %v398, %v399
        %v401 = vrot.slane %v400, 2
        %v402 = vadd.f32 %v400, %v401
        %v403 = vrot.slane %v402, 1
        %v404 = vadd.f32 %v402, %v403
        %406 = vset.pattern.permute.xlu0 0
        %407 = vperm.xlu0 %406, %v227
        %v408 = vpop.permute.xlu0 %407
        %v410 = vadd.f32 %v404, %v408
        %411 = vst [vmem:[%s190] sm:$0x1] %v410
        %s412 = sand.u32 %s115, 1
        %s413 = scalar_lea.sflag [#allocation3], %s412
        %s414 = sand.u32 %s115, 1
        %s415 = scalar_lea.vmem [#allocation2], %s414
        // Predicated region
        $region37: #{tpu_custom_call.1} parent=35 // pred_check
          %p416 = pneg %p125
        $region38: #{tpu_custom_call.1} parent=35 // pred_check_branch
          %418 = sbr.rel (%p416) target = $region40
        $region39: #{tpu_custom_call.1} parent=35 // pred_region
          %420 = vsyncadd %s413, 0
          %s421 = scalar_lea.hbm %s4, %s18
          %s423 = sshll.u32 %s415, 4
          %s424 = int_to_ptr.vmem [resolvable:$true] %s423
          %s425 = sshll.u32 %s421, 4
          %s426 = int_to_ptr.hbm [resolvable:$true] %s425
          %428 = dma.vmem_to_hbm [thread:$0]  %s424, 16, %s426, %s413
        $region40: #{tpu_custom_call.1} parent=35 // pred_fallthru
          _
      $region36: #{tpu_custom_call.1} parent=5 // pred_fallthru
        _
      %p429 = scmp.le.s32.totalorder 2, %s13
      // Predicated region
      $region41: #{tpu_custom_call.1} parent=5 // pred_check
        %p430 = pneg %p429
      $region42: #{tpu_custom_call.1} parent=5 // pred_check_branch
        %432 = sbr.rel (%p430) target = $region44
      $region43: #{tpu_custom_call.1} parent=5 // pred_region
        %s433 = ssub.s32 %s13, 2
        // Predicated region
        $region45: #{tpu_custom_call.1} parent=43 // pred_check
          %p434 = pneg %p131
        $region46: #{tpu_custom_call.1} parent=43 // pred_check_branch
          %436 = sbr.rel (%p434) target = $region48
        $region47: #{tpu_custom_call.1} parent=43 // pred_region
          %s437 = sand.u32 %s116, 1
          %s438 = scalar_lea.sflag [#allocation3], %s437
          %s439 = sand.u32 %s116, 1
          %s440 = scalar_lea.vmem [#allocation2], %s439
          %442 = dma.done %s438, 16
        $region48: #{tpu_custom_call.1} parent=43 // pred_fallthru
          _
      $region44: #{tpu_custom_call.1} parent=5 // pred_fallthru
        _
    $region6: #{tpu_custom_call.1} parent=1 // loop_footer
      %s17 = sadd.s32 1, %s13
    $region7: #{tpu_custom_call.1} parent=1 // loop_footer_branch
      %12 = sbr.rel target = $region3
    $region8: #{tpu_custom_call.1} parent=1 // loop_exit
      _
    %443 = vsyncpa [#allocation3], 1
    %s444 = scalar_lea.sflag [#allocation3], 1
    %445 = vsyncpa %s444, 1

</llo_original>
